<compile_context>
chip_gen: v7x
topology: tpu7x:2x2x1
jax: 0.10.0
libtpu: 0.0.40
codegen_flags: <defaults>
</compile_context>

<pallas_src>
import jax
import jax.numpy as jnp
from jax import lax
from jax.experimental import pallas as pl
from jax.experimental.pallas import tpu as pltpu

_LANE = 128


# --------------------------------------------------------------------------- #
# Kernels
# --------------------------------------------------------------------------- #
def _dino_matmul_kernel(x_ref, w_ref, o_ref):
    """Single-K path.  Grid = (out_dim tiles, batch tiles); full in_dim per tile."""
    o_ref[...] = lax.dot_general(
        x_ref[...], w_ref[...],                       # (tm, K) x (tn, K)
        dimension_numbers=(((1,), (1,)), ((), ())),   # contract last dims (trans_b)
        preferred_element_type=jnp.float32,
    ).astype(o_ref.dtype)


def _dino_matmul_kernel_multi_k(x_ref, w_ref, o_ref, acc_ref):
    """Multi-K path (in_dim > one tile).  Grid = (out, batch, K); K is reduction."""
    @pl.when(pl.program_id(2) == 0)
    def _():
        acc_ref[...] = jnp.zeros_like(acc_ref)

    acc_ref[...] += lax.dot_general(
        x_ref[...], w_ref[...],
        dimension_numbers=(((1,), (1,)), ((), ())),
        preferred_element_type=jnp.float32,
    )

    @pl.when(pl.program_id(2) == pl.num_programs(2) - 1)
    def _():
        o_ref[...] = acc_ref[...].astype(o_ref.dtype)


# --------------------------------------------------------------------------- #
# Tiling helpers
# --------------------------------------------------------------------------- #
def _round_up(x, m):
    return ((x + m - 1) // m) * m


def _largest_divisor_tile(n, cap, granule):
    """Largest multiple of `granule` that divides `n` and is <= cap (0 if none)."""
    if cap < granule or n % granule:
        return 0
    base = n // granule
    best = 0
    d = 1
    while d * d <= base:
        if base % d == 0:
            for q in (d, base // d):
                cand = q * granule
                if cand <= cap:
                    best = max(best, cand)
        d += 1
    return best


def _physical_vmem_bytes():
    try:
        return int(pltpu.get_tpu_info().vmem_capacity_bytes)
    except Exception:
        return 64 << 20  # conservative default (v7x-sized per-core VMEM)


def _pick_tiles(M, N, K, cb, ob, vmem_bytes):
    """Generation-aware tile defaults (v5e/v6e: 128 MiB VMEM; v7x: 64 MiB/TC)."""
    big_vmem = vmem_bytes >= (100 << 20)
    budget = (vmem_bytes * 7) // 16              # double-buffered tile working set

    # K: stay on the single-pass path (no reduction axis, no accumulator) for any
    # realistic DINO in_dim; if K > 2048 pick a K tile that divides K so the
    # weight is never padded on the contraction axis.
    if K <= 2048:
        tk = K
    else:
        tk = _largest_divisor_tile(K, 2048, _LANE) or 2048
    multi_k = tk != K

    # M: keep the batch resident (the x tile is tiny at DINO's small in_dim) so
    # the weight -- the dominant HBM array -- is streamed exactly once per call.
    tm_cap = (4 << 20) // max(1, tk * cb)        # x tile <= ~4 MiB
    tm_cap = max(256, min(2048, (tm_cap // 8) * 8))
    tm = M if M <= tm_cap else tm_cap

    # N: lane-dense, MXU-aligned, VMEM-fitting; prefer a tile that divides
    # out_dim so neither the weight nor the output needs padding in HBM.
    acc_per_tn = tm * 4 if multi_k else 0        # f32 accumulator scratch
    fixed = 2 * tm * tk * cb
    per_tn = 2 * tk * cb + 2 * tm * ob + acc_per_tn
    tn_fit = max(_LANE, (budget - fixed) // max(1, per_tn))
    n_cap = 4096 if big_vmem else 2048           # v7x: 2 TCs, 64 MiB each
    tn_limit = int(min(n_cap, tn_fit))
    if N <= tn_limit:
        tn = N
    else:
        tn = (_largest_divisor_tile(N, tn_limit, 256)
              or _largest_divisor_tile(N, tn_limit, _LANE)
              or max(_LANE, (tn_limit // _LANE) * _LANE))
    return tm, tn, tk


# --------------------------------------------------------------------------- #
# Public API
# --------------------------------------------------------------------------- #
def prepare_dino_head_weights(weight_v, weight_g, compute_dtype=jnp.bfloat16):
    """Fold the weight-norm scale g/||v||_row into the weight (once, in f32).

    weight_v: (out_dim, in_dim); weight_g: (out_dim, 1) (frozen to 1 in DINOHead).
    For inference with static weights call this once and cache the result: the
    per-call forward then performs zero extra full-weight HBM passes.
    NOTE: no epsilon on the row norm, matching torch weight_norm (an all-zero
    weight_v row yields inf/NaN, same as PyTorch).
    """
    v32 = weight_v.astype(jnp.float32)
    row_norm = jnp.sqrt(jnp.sum(v32 * v32, axis=1, keepdims=True))
    w_eff = v32 * (weight_g.astype(jnp.float32) / row_norm)
    return w_eff.astype(compute_dtype)


def dino_head_apply(x, w_eff, *, out_dtype=None, tm=None, tn=None, tk=None):
    """y = x @ w_eff.T with w_eff (out_dim, in_dim) prepared by
    prepare_dino_head_weights (scale already folded, in the compute dtype)."""
    in_dim = x.shape[-1]
    out_dim, k_w = w_eff.shape
    if k_w != in_dim:
        raise ValueError(f"in_dim mismatch: x has {in_dim}, weight has {k_w}")
    lead = x.shape[:-1]
    compute_dtype = w_eff.dtype
    # bf16 output by default: for DINO-sized out_dim an f32 output store would
    # dominate HBM traffic.  Pass out_dtype=jnp.float32 for strict parity.
    out_dtype = out_dtype or compute_dtype

    x2d = x.reshape(-1, in_dim).astype(compute_dtype)
    M, K, N = x2d.shape[0], in_dim, out_dim

    cb = jnp.dtype(compute_dtype).itemsize
    ob = jnp.dtype(out_dtype).itemsize
    vmem_bytes = _physical_vmem_bytes()
    d_tm, d_tn, d_tk = _pick_tiles(M, N, K, cb, ob, vmem_bytes)
    tm = tm or d_tm
    tn = tn or d_tn
    tk = tk or d_tk

    # Padding: typically only x (cheap).  The weight is only padded when
    # out_dim / in_dim have no 128-aligned divisor tile (rare for DINO shapes).
    Mp, Np, Kp = _round_up(M, tm), _round_up(N, tn), _round_up(K, tk)
    if (Mp, Kp) != (M, K):
        x2d = jnp.pad(x2d, ((0, Mp - M), (0, Kp - K)))
    wc = w_eff
    if (Np, Kp) != (N, K):
        wc = jnp.pad(wc, ((0, Np - N), (0, Kp - K)))

    n_m, n_n, n_k = Mp // tm, Np // tn, Kp // tk

    if n_k == 1:
        # Grid: out_dim tiles OUTER, batch tiles INNER.  The weight index_map
        # depends only on the outer index, so Pallas fetches each weight tile
        # exactly once (no re-stream across batch tiles).
        grid = (n_n, n_m)
        in_specs = [
            pl.BlockSpec((tm, Kp), lambda j, i: (i, 0)),    # x tile (tm, K)
            pl.BlockSpec((tn, Kp), lambda j, i: (j, 0)),    # weight tile (tn, K)
        ]
        out_specs = pl.BlockSpec((tm, tn), lambda j, i: (i, j))
        scratch_shapes = []
        kernel = _dino_matmul_kernel
        dim_sem = ("parallel", "parallel")
        acc_bytes = 0
        w_passes, x_passes = 1, (1 if n_m == 1 else n_n)
    else:
        grid = (n_n, n_m, n_k)
        in_specs = [
            pl.BlockSpec((tm, tk), lambda j, i, k: (i, k)),
            pl.BlockSpec((tn, tk), lambda j, i, k: (j, k)),
        ]
        out_specs = pl.BlockSpec((tm, tn), lambda j, i, k: (i, j))
        scratch_shapes = [pltpu.VMEM((tm, tn), jnp.float32)]
        kernel = _dino_matmul_kernel_multi_k
        dim_sem = ("parallel", "parallel", "arbitrary")
        acc_bytes = tm * tn * 4
        w_passes, x_passes = n_m, n_n

    vmem_need = 2 * (tm * tk + tn * tk) * cb + 2 * tm * tn * ob + acc_bytes
    vmem_limit = int(min(vmem_bytes * 3 // 4,
                         max(vmem_need + (8 << 20), 32 << 20)))

    cost = pl.CostEstimate(
        flops=2 * M * N * K,
        transcendentals=0,
        bytes_accessed=int(x_passes * M * K * cb + w_passes * N * K * cb
                           + M * N * ob),
    )

    y2d = pl.pallas_call(
        kernel,
        out_shape=jax.ShapeDtypeStruct((Mp, Np), out_dtype),
        grid_spec=pltpu.PrefetchScalarGridSpec(
            num_scalar_prefetch=0,
            grid=grid,
            in_specs=in_specs,
            out_specs=out_specs,
            scratch_shapes=scratch_shapes,
        ),
        compiler_params=pltpu.CompilerParams(
            dimension_semantics=dim_sem,
            vmem_limit_bytes=vmem_limit,
        ),
        cost_estimate=cost,
    )(x2d, wc)

    if (Mp, Np) != (M, N):
        y2d = y2d[:M, :N]
    return y2d.reshape(*lead, N)


def dino_head_forward(x, weight_v, weight_g, *, compute_dtype=jnp.bfloat16,
                      out_dtype=None, tm=None, tn=None, tk=None):
    """One-shot DINOHead forward: fold the weight-norm scale, then matmul.

    For repeated inference with static weights, call prepare_dino_head_weights
    once, cache the result, and call dino_head_apply directly -- that removes
    the per-call row_norm + cast passes over the full weight.
    """
    w_eff = prepare_dino_head_weights(weight_v, weight_g, compute_dtype)
    return dino_head_apply(x, w_eff, out_dtype=out_dtype, tm=tm, tn=tn, tk=tk)


# --------------------------------------------------------------------------- #
# Smoke test
# --------------------------------------------------------------------------- #
if __name__ == "__main__":
    # Small shapes consistent with DINOHead: in_dim=32, out_dim=256, batch=16.
    in_dim, out_dim, batch = 32, 256, 16

    key = jax.random.PRNGKey(0)
    kx, kw = jax.random.split(key)
    x = jax.random.normal(kx, (batch, in_dim), dtype=jnp.float32)

    # Synthetic weight_norm decomposition of the Linear weight (g frozen to 1).
    weight_v = jax.random.normal(kw, (out_dim, in_dim), dtype=jnp.float32) * 0.02
    weight_g = jnp.ones((out_dim, 1), dtype=jnp.float32)

    # Reference (plain JAX) to validate semantics.
    w_eff_ref = weight_g * weight_v / jnp.linalg.norm(weight_v, axis=1, keepdims=True)
    y_ref = x @ w_eff_ref.T

    # Fast path: cached, pre-folded bf16 weight; bf16 output (loose tolerance).
    w_eff_bf16 = prepare_dino_head_weights(weight_v, weight_g, jnp.bfloat16)
    y_bf16 = jax.block_until_ready(dino_head_apply(x, w_eff_bf16))
    assert y_bf16.shape == (batch, out_dim)
    assert y_bf16.dtype == jnp.bfloat16
    assert jnp.allclose(y_bf16.astype(jnp.float32), y_ref, atol=7.5e-2, rtol=7.5e-2)

    # Strict-parity path: f32 compute + f32 output via the convenience wrapper.
    y_f32 = jax.block_until_ready(
        dino_head_forward(x, weight_v, weight_g,
                          compute_dtype=jnp.float32, out_dtype=jnp.float32))
    assert y_f32.dtype == jnp.float32
    assert jnp.allclose(y_f32, y_ref, atol=1e-4, rtol=1e-4)

    print("KERNEL_OK")
</pallas_src>

<mosaic_0001>
module attributes {stable_mosaic.version = 11 : i64} {
  func.func @_dino_matmul_kernel(%arg0: i32, %arg1: i32, %arg2: memref<16x32xbf16, #tpu.memory_space<vmem>>, %arg3: memref<256x32xbf16, #tpu.memory_space<vmem>>, %arg4: memref<16x256xbf16, #tpu.memory_space<vmem>>) attributes {dimension_semantics = [#tpu.dimension_semantics<parallel>, #tpu.dimension_semantics<parallel>], iteration_bounds = array<i64: 1, 1>, scalar_prefetch = 0 : i64, scratch_operands = 0 : i64, tpu.core_type = #tpu.core_type<tc>, window_params = [{transform_indices = @transform_0, window_bounds = array<i64: 16, 32>}, {transform_indices = @transform_1, window_bounds = array<i64: 256, 32>}, {transform_indices = @transform_2, window_bounds = array<i64: 16, 256>}]} {
    %c0 = arith.constant 0 : index
    %c0_0 = arith.constant 0 : index
    %0 = vector.load %arg2[%c0, %c0_0] : memref<16x32xbf16, #tpu.memory_space<vmem>>, vector<16x32xbf16>
    %c0_1 = arith.constant 0 : index
    %c0_2 = arith.constant 0 : index
    %1 = vector.load %arg3[%c0_1, %c0_2] : memref<256x32xbf16, #tpu.memory_space<vmem>>, vector<256x32xbf16>
    %cst = arith.constant dense<0.000000e+00> : vector<16x256xf32>
    %2 = tpu.matmul %0, %1, %cst {dimension_numbers = #tpu.dot_dimension_numbers<[1], [1], [0], [0], [0, 0, 1, 0], [], []>} : vector<16x32xbf16>, vector<256x32xbf16>, vector<16x256xf32> -> vector<16x256xf32>
    %3 = arith.truncf %2 : vector<16x256xf32> to vector<16x256xbf16>
    %c0_3 = arith.constant 0 : index
    %c0_4 = arith.constant 0 : index
    %4 = vector.load %arg4[%c0_3, %c0_4] : memref<16x256xbf16, #tpu.memory_space<vmem>>, vector<16x256xbf16>
    tpu.vector_store %arg4[%c0_3, %c0_4], %3 {strides = array<i32>} : memref<16x256xbf16, #tpu.memory_space<vmem>>, vector<16x256xbf16>,
    return
  }
  func.func @transform_0(%arg0: i32, %arg1: i32) -> (i32, i32) {
    %c0_i32 = arith.constant 0 : i32
    %c0_i32_0 = arith.constant 0 : i32
    return %arg1, %c0_i32 : i32, i32
  }
  func.func @transform_1(%arg0: i32, %arg1: i32) -> (i32, i32) {
    %c0_i32 = arith.constant 0 : i32
    %c0_i32_0 = arith.constant 0 : i32
    return %arg0, %c0_i32 : i32, i32
  }
  func.func @transform_2(%arg0: i32, %arg1: i32) -> (i32, i32) {
    %c0_i32 = arith.constant 0 : i32
    return %arg1, %arg0 : i32, i32
  }
}

</mosaic_0001>

<llo_original>
// kernel: tpu_custom_call.1
$region0: #{tpu_custom_call.1}
  #allocation0 [shape = 'u32[]', space=smem, size = 0x4, offset = 0x4, fixed_abs, tag = 'smem constant byte address 0x4 - core index']
  #allocation1 [shape = 'u32[144,128]{1,0:T(1,128)}', space=vmem, size = 0x12000, scoped, tag = 'internal scratch']
  %s0 = inlined_call_operand.vmem [shape: bf16[16,32], index: 0, kind: input, shape index: {}]
  %s1 = inlined_call_operand.vmem [shape: bf16[256,32], index: 1, kind: input, shape index: {}]
  %s2 = inlined_call_operand.hbm [shape: bf16[16,256], index: 2, kind: output, shape index: {}]
  %s3 = sld [smem:[#allocation0]]
  $region18: #{tpu_custom_call.1} parent=0
    _
  %s5 = ssub.s32 1, %s3
  %s6 = scalar_select 0, %s5, %s3
  $region1: #{tpu_custom_call.1} parent=0
    #allocation2 [shape = 'u8[8192]{0}', space=vmem, size = 0x2000, scoped, tag = 'output window, operand 0, single buffered']
    #allocation3 [shape = 's32[1]{0}', space=sflag, size = 0x4, scoped, tag = 'scoped memory for tpu_custom_call.1']
    %7 = vsyncpa [#allocation3], 0
    // Predicated region
    $region2: #{tpu_custom_call.1} parent=1 // pred_check
      _
    $region3: #{tpu_custom_call.1} parent=1 // pred_check_branch
      %9 = sbr.rel (0) target = $region5
    $region4: #{tpu_custom_call.1} parent=1 // pred_region
      _
    $region5: #{tpu_custom_call.1} parent=1 // pred_fallthru
      _
    // Predicated region
    $region6: #{tpu_custom_call.1} parent=1 // pred_check
      _
    $region7: #{tpu_custom_call.1} parent=1 // pred_check_branch
      %11 = sbr.rel (0) target = $region9
    $region8: #{tpu_custom_call.1} parent=1 // pred_region
      _
    $region9: #{tpu_custom_call.1} parent=1 // pred_fallthru
      _
    %v13 = vld [vmem:[%s0] sm:$0xf]
    %v14 = vld [vmem:[%s0 + $0x4] sm:$0xf]
    %v15 = vld [vmem:[%s1] sm:$0xf]
    %v16 = vld [vmem:[%s1 + $0x4] sm:$0xf]
    %v17 = vld [vmem:[%s1 + $0x8] sm:$0xf]
    %v18 = vld [vmem:[%s1 + $0xc] sm:$0xf]
    %v19 = vld [vmem:[%s1 + $0x10] sm:$0xf]
    %v20 = vld [vmem:[%s1 + $0x14] sm:$0xf]
    %v21 = vld [vmem:[%s1 + $0x18] sm:$0xf]
    %v22 = vld [vmem:[%s1 + $0x1c] sm:$0xf]
    %v23 = vld [vmem:[%s1 + $0x20] sm:$0xf]
    %v24 = vld [vmem:[%s1 + $0x24] sm:$0xf]
    %v25 = vld [vmem:[%s1 + $0x28] sm:$0xf]
    %v26 = vld [vmem:[%s1 + $0x2c] sm:$0xf]
    %v27 = vld [vmem:[%s1 + $0x30] sm:$0xf]
    %v28 = vld [vmem:[%s1 + $0x34] sm:$0xf]
    %v29 = vld [vmem:[%s1 + $0x38] sm:$0xf]
    %v30 = vld [vmem:[%s1 + $0x3c] sm:$0xf]
    %v31 = vld [vmem:[%s1 + $0x40] sm:$0xf]
    %v32 = vld [vmem:[%s1 + $0x44] sm:$0xf]
    %v33 = vld [vmem:[%s1 + $0x48] sm:$0xf]
    %v34 = vld [vmem:[%s1 + $0x4c] sm:$0xf]
    %v35 = vld [vmem:[%s1 + $0x50] sm:$0xf]
    %v36 = vld [vmem:[%s1 + $0x54] sm:$0xf]
    %v37 = vld [vmem:[%s1 + $0x58] sm:$0xf]
    %v38 = vld [vmem:[%s1 + $0x5c] sm:$0xf]
    %v39 = vld [vmem:[%s1 + $0x60] sm:$0xf]
    %v40 = vld [vmem:[%s1 + $0x64] sm:$0xf]
    %v41 = vld [vmem:[%s1 + $0x68] sm:$0xf]
    %v42 = vld [vmem:[%s1 + $0x6c] sm:$0xf]
    %v43 = vld [vmem:[%s1 + $0x70] sm:$0xf]
    %v44 = vld [vmem:[%s1 + $0x74] sm:$0xf]
    %v45 = vld [vmem:[%s1 + $0x78] sm:$0xf]
    %v46 = vld [vmem:[%s1 + $0x7c] sm:$0xf]
    %v49 = vunpack.c.l.b16 %v13
    %v50 = vunpack.c.l.b16 %v14
    %v51 = vpack.c.b16 %v50, %v49
    %v84 = vunpack.c.l.b16 %v15
    %v85 = vunpack.c.l.b16 %v16
    %v86 = vunpack.c.l.b16 %v17
    %v87 = vunpack.c.l.b16 %v18
    %v88 = vunpack.c.l.b16 %v19
    %v89 = vunpack.c.l.b16 %v20
    %v90 = vunpack.c.l.b16 %v21
    %v91 = vunpack.c.l.b16 %v22
    %v92 = vunpack.c.l.b16 %v23
    %v93 = vunpack.c.l.b16 %v24
    %v94 = vunpack.c.l.b16 %v25
    %v95 = vunpack.c.l.b16 %v26
    %v96 = vunpack.c.l.b16 %v27
    %v97 = vunpack.c.l.b16 %v28
    %v98 = vunpack.c.l.b16 %v29
    %v99 = vunpack.c.l.b16 %v30
    %v100 = vunpack.c.l.b16 %v31
    %v101 = vunpack.c.l.b16 %v32
    %v102 = vunpack.c.l.b16 %v33
    %v103 = vunpack.c.l.b16 %v34
    %v104 = vunpack.c.l.b16 %v35
    %v105 = vunpack.c.l.b16 %v36
    %v106 = vunpack.c.l.b16 %v37
    %v107 = vunpack.c.l.b16 %v38
    %v108 = vunpack.c.l.b16 %v39
    %v109 = vunpack.c.l.b16 %v40
    %v110 = vunpack.c.l.b16 %v41
    %v111 = vunpack.c.l.b16 %v42
    %v112 = vunpack.c.l.b16 %v43
    %v113 = vunpack.c.l.b16 %v44
    %v114 = vunpack.c.l.b16 %v45
    %v115 = vunpack.c.l.b16 %v46
    %v116 = vpack.c.b16 %v85, %v84
    %v117 = vpack.c.b16 %v87, %v86
    %v118 = vpack.c.b16 %v89, %v88
    %v119 = vpack.c.b16 %v91, %v90
    %v120 = vpack.c.b16 %v93, %v92
    %v121 = vpack.c.b16 %v95, %v94
    %v122 = vpack.c.b16 %v97, %v96
    %v123 = vpack.c.b16 %v99, %v98
    %v124 = vpack.c.b16 %v101, %v100
    %v125 = vpack.c.b16 %v103, %v102
    %v126 = vpack.c.b16 %v105, %v104
    %v127 = vpack.c.b16 %v107, %v106
    %v128 = vpack.c.b16 %v109, %v108
    %v129 = vpack.c.b16 %v111, %v110
    %v130 = vpack.c.b16 %v113, %v112
    %v131 = vpack.c.b16 %v115, %v114
    %vm132 = vcmask 261120
    %v134 = vsel %vm132, %v51, 0
    %v137 = vsel %vm132, %v116, 0
    %v140 = vsel %vm132, %v117, 0
    %v143 = vsel %vm132, %v118, 0
    %v146 = vsel %vm132, %v119, 0
    %v149 = vsel %vm132, %v120, 0
    %v152 = vsel %vm132, %v121, 0
    %v155 = vsel %vm132, %v122, 0
    %v158 = vsel %vm132, %v123, 0
    %v161 = vsel %vm132, %v124, 0
    %v164 = vsel %vm132, %v125, 0
    %v167 = vsel %vm132, %v126, 0
    %v170 = vsel %vm132, %v127, 0
    %v173 = vsel %vm132, %v128, 0
    %v176 = vsel %vm132, %v129, 0
    %v179 = vsel %vm132, %v130, 0
    %v182 = vsel %vm132, %v131, 0
    %184 = vmatprep.subr.bf16.mxu0 0
    %185 = vmatpush1.bf16.xpose.msra.mxu0 %v137
    %186 = vmatprep.subr.bf16.mxu0 0
    %187 = vmatpush1.bf16.xpose.msra.mxu0 %v140
    %188 = vmatprep.subr.bf16.mxu0 0
    %189 = vmatpush1.bf16.xpose.msra.mxu0 %v143
    %190 = vmatprep.subr.bf16.mxu0 0
    %191 = vmatpush1.bf16.xpose.msra.mxu0 %v146
    %192 = vmatprep.subr.bf16.mxu0 0
    %193 = vmatpush1.bf16.xpose.msra.mxu0 %v149
    %194 = vmatprep.subr.bf16.mxu0 0
    %195 = vmatpush1.bf16.xpose.msra.mxu0 %v152
    %196 = vmatprep.subr.bf16.mxu0 0
    %197 = vmatpush1.bf16.xpose.msra.mxu0 %v155
    %198 = vmatprep.subr.bf16.mxu0 0
    %199 = vmatpush1.bf16.xpose.msra.mxu0 %v158
    %200 = vmatprep.subr.bf16.mxu0 0
    %201 = vmatpush1.bf16.xpose.msra.mxu0 %v161
    %202 = vmatprep.subr.bf16.mxu0 0
    %203 = vmatpush1.bf16.xpose.msra.mxu0 %v164
    %204 = vmatprep.subr.bf16.mxu0 0
    %205 = vmatpush1.bf16.xpose.msra.mxu0 %v167
    %206 = vmatprep.subr.bf16.mxu0 0
    %207 = vmatpush1.bf16.xpose.msra.mxu0 %v170
    %208 = vmatprep.subr.bf16.mxu0 0
    %209 = vmatpush1.bf16.xpose.msra.mxu0 %v173
    %210 = vmatprep.subr.bf16.mxu0 0
    %211 = vmatpush1.bf16.xpose.msra.mxu0 %v176
    %212 = vmatprep.subr.bf16.mxu0 0
    %213 = vmatpush1.bf16.xpose.msra.mxu0 %v179
    %214 = vmatprep.subr.bf16.mxu0 0
    %215 = vmatpush1.bf16.xpose.msra.mxu0 %v182
    %216 = vmatprep.mubr.bf16.mxu0 0
    %217 = vmatmul.mubr.bf16.gmra.mrb[0].mxu0 %v134
    %v218 = vpop.f32.mrb[0].mxu0
    %v219 = vadd.f32 0.0, %v218
    %v220 = vpop.f32.mrb[0].mxu0
    %v221 = vadd.f32 0.0, %v220
    %v222 = vpop.f32.mrb[0].mxu0
    %v223 = vadd.f32 0.0, %v222
    %v224 = vpop.f32.mrb[0].mxu0
    %v225 = vadd.f32 0.0, %v224
    %226 = vdwg.mxu0
    %v227 = vpack.c.bf16 %v223, %v219
    %v228 = vpack.c.bf16 %v225, %v221
    %v231 = vunpack.c.l.b16 %v227
    %v232 = vunpack.c.l.b16 %v228
    %v233 = vunpack.c.h.b16 %v227
    %v234 = vunpack.c.h.b16 %v228
    %v235 = vpack.c.b16 %v232, %v231
    %v236 = vpack.c.b16 %v234, %v233
    %239 = vst [vmem:[#allocation2] sm:$0xff] %v235
    %240 = vst [vmem:[#allocation2 + $0x8] sm:$0xff] %v236
    // Predicated region
    $region10: #{tpu_custom_call.1} parent=1 // pred_check
      _
    $region11: #{tpu_custom_call.1} parent=1 // pred_check_branch
      %242 = sbr.rel (0) target = $region13
    $region12: #{tpu_custom_call.1} parent=1 // pred_region
      %s244 = ssub.s32 256, 256
      %245 = vsyncadd [#allocation3], %s244
      %s246 = sshll.u32 [#allocation2], 4
      %s247 = int_to_ptr.vmem [resolvable:$true] %s246
      %252 = dma.vmem_to_hbm [thread:$0]  %s247, 256, %s2, [#allocation3], 128, 128, 8
    $region13: #{tpu_custom_call.1} parent=1 // pred_fallthru
      _
    // Predicated region
    $region14: #{tpu_custom_call.1} parent=1 // pred_check
      _
    $region15: #{tpu_custom_call.1} parent=1 // pred_check_branch
      %254 = sbr.rel (0) target = $region17
    $region16: #{tpu_custom_call.1} parent=1 // pred_region
      %255 = dma.done [#allocation3], 256
    $region17: #{tpu_custom_call.1} parent=1 // pred_fallthru
      _
    %256 = vsyncpa [#allocation3], 1

</llo_original>
